<compile_context>
chip_gen: v7x
topology: tpu7x:2x2x1
jax: 0.10.0
libtpu: 0.0.40
codegen_flags: <defaults>
</compile_context>

<pallas_src>
import jax
import jax.numpy as jnp
from jax.experimental import pallas as pl
from jax.experimental.pallas import tpu as pltpu

IN_FEATURES = 64
OUT_FEATURES = 64


def _round_up(x, n):
    return ((x + n - 1) // n) * n


def linear_kernel(x_ref, wt_ref, b_ref, o_ref):
    # x_ref: (TM, IN), wt_ref: (IN, OUT), b_ref: (1, OUT) f32, o_ref: (TM, OUT)
    acc = jnp.dot(x_ref[...], wt_ref[...], preferred_element_type=jnp.float32)
    o_ref[...] = (acc + b_ref[...]).astype(o_ref.dtype)


def my_linear_cpu(act, weight, bias, *, tile_m=4096, compute_dtype=None):
    """y = act @ weight.T + bias  (torch.nn.Linear(64, 64, bias=True))."""
    orig_shape = act.shape
    out_dtype = act.dtype
    in_features = weight.shape[1]
    out_features = weight.shape[0]

    m = 1
    for d in orig_shape[:-1]:
        m *= d

    x2d = act.reshape(m, in_features)
    wt = jnp.transpose(weight)                       # (in, out), done once
    b2d = bias.reshape(1, out_features).astype(jnp.float32)

    if compute_dtype is not None:
        # Memory-bound kernel: narrower streaming dtype, f32 accumulation.
        x2d = x2d.astype(compute_dtype)
        wt = wt.astype(compute_dtype)

    # Tile M; pad wrapper-side so every block is full (TM shrinks for tiny m).
    tm = min(tile_m, _round_up(m, 8))
    m_pad = _round_up(m, tm)
    if m_pad != m:
        x2d = jnp.pad(x2d, ((0, m_pad - m), (0, 0)))

    grid = (m_pad // tm,)

    out = pl.pallas_call(
        linear_kernel,
        out_shape=jax.ShapeDtypeStruct((m_pad, out_features), out_dtype),
        grid=grid,
        in_specs=[
            pl.BlockSpec((tm, in_features), lambda i: (i, 0)),
            # Constant index maps -> weight/bias stay resident in VMEM.
            pl.BlockSpec((in_features, out_features), lambda i: (0, 0)),
            pl.BlockSpec((1, out_features), lambda i: (0, 0)),
        ],
        out_specs=pl.BlockSpec((tm, out_features), lambda i: (i, 0)),
        compiler_params=pltpu.CompilerParams(
            dimension_semantics=("parallel",),
        ),
    )(x2d, wt, b2d)

    if m_pad != m:
        out = out[:m]
    return out.reshape(*orig_shape[:-1], out_features)


if __name__ == "__main__":
    key = jax.random.PRNGKey(0)
    k_act, k_w, k_b = jax.random.split(key, 3)

    # Deterministic synthetic parameters mimicking torch Linear init bounds.
    bound = 1.0 / (IN_FEATURES ** 0.5)
    weight = jax.random.uniform(
        k_w, (OUT_FEATURES, IN_FEATURES), jnp.float32, -bound, bound
    )
    bias = jax.random.uniform(k_b, (OUT_FEATURES,), jnp.float32, -bound, bound)

    # Small input: batch=2, seq=8, hidden=64 (in_features fixed by the module).
    act = jax.random.normal(k_act, (2, 8, IN_FEATURES), jnp.float32)

    ref = act @ weight.T + bias

    # Default f32 path (strict tolerance).
    out = my_linear_cpu(act, weight, bias)
    jax.block_until_ready(out)
    assert out.shape == (2, 8, OUT_FEATURES)
    assert jnp.allclose(out, ref, atol=1e-5, rtol=1e-5)

    # bf16-streaming path (f32 accumulation) — the memory-bound fast path.
    out_bf16 = my_linear_cpu(act, weight, bias, compute_dtype=jnp.bfloat16)
    jax.block_until_ready(out_bf16)
    assert out_bf16.shape == (2, 8, OUT_FEATURES)
    assert jnp.allclose(out_bf16, ref, atol=1e-1, rtol=1e-1)

    print("KERNEL_OK")
</pallas_src>

<mosaic_0001>
module attributes {stable_mosaic.version = 11 : i64} {
  func.func @linear_kernel(%arg0: i32, %arg1: memref<16x64xf32, #tpu.memory_space<vmem>>, %arg2: memref<64x64xf32, #tpu.memory_space<vmem>>, %arg3: memref<1x64xf32, #tpu.memory_space<vmem>>, %arg4: memref<16x64xf32, #tpu.memory_space<vmem>>) attributes {dimension_semantics = [#tpu.dimension_semantics<parallel>], iteration_bounds = array<i64: 1>, scalar_prefetch = 0 : i64, scratch_operands = 0 : i64, tpu.core_type = #tpu.core_type<tc>, window_params = [{transform_indices = @transform_0, window_bounds = array<i64: 16, 64>}, {pipeline_mode = #tpu.pipeline_mode<synchronous>, transform_indices = @transform_1, window_bounds = array<i64: 64, 64>}, {pipeline_mode = #tpu.pipeline_mode<synchronous>, transform_indices = @transform_2, window_bounds = array<i64: 1, 64>}, {transform_indices = @transform_3, window_bounds = array<i64: 16, 64>}]} {
    %c0 = arith.constant 0 : index
    %c0_0 = arith.constant 0 : index
    %0 = vector.load %arg1[%c0, %c0_0] : memref<16x64xf32, #tpu.memory_space<vmem>>, vector<16x64xf32>
    %c0_1 = arith.constant 0 : index
    %c0_2 = arith.constant 0 : index
    %1 = vector.load %arg2[%c0_1, %c0_2] : memref<64x64xf32, #tpu.memory_space<vmem>>, vector<64x64xf32>
    %cst = arith.constant dense<0.000000e+00> : vector<16x64xf32>
    %2 = tpu.matmul %0, %1, %cst {dimension_numbers = #tpu.dot_dimension_numbers<[1], [0], [0], [1], [0, 0, 1, 1], [], []>} : vector<16x64xf32>, vector<64x64xf32>, vector<16x64xf32> -> vector<16x64xf32>
    %c0_3 = arith.constant 0 : index
    %c0_4 = arith.constant 0 : index
    %3 = vector.load %arg3[%c0_3, %c0_4] : memref<1x64xf32, #tpu.memory_space<vmem>>, vector<1x64xf32>
    %4 = vector.broadcast %3 : vector<1x64xf32> to vector<16x64xf32>
    %5 = arith.addf %2, %4 : vector<16x64xf32>
    %c0_5 = arith.constant 0 : index
    %c0_6 = arith.constant 0 : index
    %6 = vector.load %arg4[%c0_5, %c0_6] : memref<16x64xf32, #tpu.memory_space<vmem>>, vector<16x64xf32>
    tpu.vector_store %arg4[%c0_5, %c0_6], %5 {strides = array<i32>} : memref<16x64xf32, #tpu.memory_space<vmem>>, vector<16x64xf32>,
    return
  }
  func.func @transform_0(%arg0: i32) -> (i32, i32) {
    %c0_i32 = arith.constant 0 : i32
    %c0_i32_0 = arith.constant 0 : i32
    return %arg0, %c0_i32 : i32, i32
  }
  func.func @transform_1(%arg0: i32) -> (i32, i32) {
    %c0_i32 = arith.constant 0 : i32
    %c0_i32_0 = arith.constant 0 : i32
    %c0_i32_1 = arith.constant 0 : i32
    return %c0_i32, %c0_i32_0 : i32, i32
  }
  func.func @transform_2(%arg0: i32) -> (i32, i32) {
    %c0_i32 = arith.constant 0 : i32
    %c0_i32_0 = arith.constant 0 : i32
    %c0_i32_1 = arith.constant 0 : i32
    return %c0_i32, %c0_i32_0 : i32, i32
  }
  func.func @transform_3(%arg0: i32) -> (i32, i32) {
    %c0_i32 = arith.constant 0 : i32
    %c0_i32_0 = arith.constant 0 : i32
    return %arg0, %c0_i32 : i32, i32
  }
}

</mosaic_0001>

<llo_original>
// kernel: tpu_custom_call.1
$region0: #{tpu_custom_call.1}
  #allocation0 [shape = 'u32[]', space=smem, size = 0x4, offset = 0x4, fixed_abs, tag = 'smem constant byte address 0x4 - core index']
  #allocation1 [shape = 'u32[144,128]{1,0:T(1,128)}', space=vmem, size = 0x12000, scoped, tag = 'internal scratch']
  %s0 = inlined_call_operand.hbm [shape: f32[16,64], index: 0, kind: input, shape index: {}]
  %s1 = inlined_call_operand.hbm [shape: f32[64,64], index: 1, kind: input, shape index: {}]
  %s2 = inlined_call_operand.vmem [shape: f32[1,64], index: 2, kind: input, shape index: {}]
  %s3 = inlined_call_operand.hbm [shape: f32[16,64], index: 3, kind: output, shape index: {}]
  %s4 = sld [smem:[#allocation0]]
  $region30: #{tpu_custom_call.1} parent=0
    _
  %s6 = ssub.s32 1, %s4
  %s7 = scalar_select 0, %s6, %s4
  $region1: #{tpu_custom_call.1} parent=0
    #allocation2 [shape = 'u8[8192]{0}', space=vmem, size = 0x2000, scoped, tag = 'input window, operand 0, single buffered']
    #allocation3 [shape = 's32[1]{0}', space=sflag, size = 0x4, scoped, tag = 'scoped memory for tpu_custom_call.1']
    #allocation4 [shape = 's32[1]{0}', space=sflag, size = 0x4, scoped, tag = 'scoped memory for tpu_custom_call.1']
    #allocation5 [shape = 'u8[32768]{0}', space=vmem, size = 0x8000, scoped, tag = 'input window, operand 1, single buffered']
    #allocation6 [shape = 's32[1]{0}', space=sflag, size = 0x4, scoped, tag = 'scoped memory for tpu_custom_call.1']
    #allocation7 [shape = 'u8[8192]{0}', space=vmem, size = 0x2000, scoped, tag = 'output window, operand 0, single buffered']
    %8 = vsyncpa [#allocation3], 0
    %9 = vsyncpa [#allocation6], 0
    %10 = vsyncpa [#allocation4], 0
    // Predicated region
    $region2: #{tpu_custom_call.1} parent=1 // pred_check
      _
    $region3: #{tpu_custom_call.1} parent=1 // pred_check_branch
      %12 = sbr.rel (0) target = $region5
    $region4: #{tpu_custom_call.1} parent=1 // pred_region
      %s14 = ssub.s32 256, 256
      %15 = vsyncadd [#allocation3], %s14
      %s16 = sshll.u32 [#allocation2], 4
      %s17 = int_to_ptr.vmem [resolvable:$true] %s16
      %22 = dma.hbm_to_vmem [thread:$0]  %s0, 256, %s17, [#allocation3], 128, 128, 8
    $region5: #{tpu_custom_call.1} parent=1 // pred_fallthru
      _
    // Predicated region
    $region6: #{tpu_custom_call.1} parent=1 // pred_check
      _
    $region7: #{tpu_custom_call.1} parent=1 // pred_check_branch
      %24 = sbr.rel (0) target = $region9
    $region8: #{tpu_custom_call.1} parent=1 // pred_region
      %s26 = ssub.s32 1024, 1024
      %27 = vsyncadd [#allocation6], %s26
      %s28 = sshll.u32 [#allocation5], 4
      %s29 = int_to_ptr.vmem [resolvable:$true] %s28
      %34 = dma.hbm_to_vmem [thread:$0]  %s1, 1024, %s29, [#allocation6], 128, 128, 8
    $region9: #{tpu_custom_call.1} parent=1 // pred_fallthru
      _
    // Predicated region
    $region10: #{tpu_custom_call.1} parent=1 // pred_check
      _
    $region11: #{tpu_custom_call.1} parent=1 // pred_check_branch
      %36 = sbr.rel (0) target = $region13
    $region12: #{tpu_custom_call.1} parent=1 // pred_region
      _
    $region13: #{tpu_custom_call.1} parent=1 // pred_fallthru
      _
    // Predicated region
    $region14: #{tpu_custom_call.1} parent=1 // pred_check
      _
    $region15: #{tpu_custom_call.1} parent=1 // pred_check_branch
      %38 = sbr.rel (0) target = $region17
    $region16: #{tpu_custom_call.1} parent=1 // pred_region
      %39 = dma.done [#allocation3], 256
    $region17: #{tpu_custom_call.1} parent=1 // pred_fallthru
      _
    // Predicated region
    $region18: #{tpu_custom_call.1} parent=1 // pred_check
      _
    $region19: #{tpu_custom_call.1} parent=1 // pred_check_branch
      %41 = sbr.rel (0) target = $region21
    $region20: #{tpu_custom_call.1} parent=1 // pred_region
      %42 = dma.done [#allocation6], 1024
    $region21: #{tpu_custom_call.1} parent=1 // pred_fallthru
      _
    %v43 = vld [vmem:[#allocation2] sm:$0xff]
    %v44 = vld [vmem:[#allocation2 + $0x8] sm:$0xff]
    %v45 = vld [vmem:[#allocation5] sm:$0xff]
    %v46 = vld [vmem:[#allocation5 + $0x8] sm:$0xff]
    %v47 = vld [vmem:[#allocation5 + $0x10] sm:$0xff]
    %v48 = vld [vmem:[#allocation5 + $0x18] sm:$0xff]
    %v49 = vld [vmem:[#allocation5 + $0x20] sm:$0xff]
    %v50 = vld [vmem:[#allocation5 + $0x28] sm:$0xff]
    %v51 = vld [vmem:[#allocation5 + $0x30] sm:$0xff]
    %v52 = vld [vmem:[#allocation5 + $0x38] sm:$0xff]
    %v53 = vld [vmem:[%s2] sm:$0x1]
    %v55 = vlaneseq
    %v56 = vshrl.u32 %v55, 7
    %v57 = vsub.s32 0, %v56
    %v58 = vrot.slane %v53, %v57
    %vm60 = vcmask 523264
    %v62 = vsel %vm60, %v43, 0
    %v65 = vsel %vm60, %v44, 0
    %67 = vmatprep.subr.mxu0 0.0
    %68 = vmatpush1.msra.mxu0 %v45
    %69 = vmatprep.subr.mxu0 0.0
    %70 = vmatpush1.msra.mxu0 %v46
    %71 = vmatprep.subr.mxu0 0.0
    %72 = vmatpush1.msra.mxu0 %v47
    %73 = vmatprep.subr.mxu0 0.0
    %74 = vmatpush1.msra.mxu0 %v48
    %75 = vmatprep.subr.mxu0 0.0
    %76 = vmatpush1.msra.mxu0 %v49
    %77 = vmatprep.subr.mxu0 0.0
    %78 = vmatpush1.msra.mxu0 %v50
    %79 = vmatprep.subr.mxu0 0.0
    %80 = vmatpush1.msra.mxu0 %v51
    %81 = vmatprep.subr.mxu0 0.0
    %82 = vmatpush1.msra.mxu0 %v52
    %83 = vmatprep.subr.mxu0 0.0
    %84 = vmatpush1.msra.mxu0 0.0
    %85 = vmatprep.subr.mxu0 0.0
    %86 = vmatpush1.msra.mxu0 0.0
    %87 = vmatprep.subr.mxu0 0.0
    %88 = vmatpush1.msra.mxu0 0.0
    %89 = vmatprep.subr.mxu0 0.0
    %90 = vmatpush1.msra.mxu0 0.0
    %91 = vmatprep.subr.mxu0 0.0
    %92 = vmatpush1.msra.mxu0 0.0
    %93 = vmatprep.subr.mxu0 0.0
    %94 = vmatpush1.msra.mxu0 0.0
    %95 = vmatprep.subr.mxu0 0.0
    %96 = vmatpush1.msra.mxu0 0.0
    %97 = vmatprep.subr.mxu0 0.0
    %98 = vmatpush1.msra.mxu0 0.0
    %99 = vmatprep.subr.mxu0 0.0
    %100 = vmatpush1.msra.mxu0 0.0
    %101 = vmatprep.subr.mxu0 0.0
    %102 = vmatpush1.msra.mxu0 0.0
    %103 = vmatprep.subr.mxu0 0.0
    %104 = vmatpush1.msra.mxu0 0.0
    %105 = vmatprep.subr.mxu0 0.0
    %106 = vmatpush1.msra.mxu0 0.0
    %107 = vmatprep.subr.mxu0 0.0
    %108 = vmatpush1.msra.mxu0 0.0
    %109 = vmatprep.subr.mxu0 0.0
    %110 = vmatpush1.msra.mxu0 0.0
    %111 = vmatprep.subr.mxu0 0.0
    %112 = vmatpush1.msra.mxu0 0.0
    %113 = vmatprep.subr.mxu0 0.0
    %114 = vmatpush1.msra.mxu0 0.0
    %115 = vmatprep.subr.mxu0 0.0
    %116 = vmatpush1.msra.mxu0 0.0
    %117 = vmatprep.subr.mxu0 0.0
    %118 = vmatpush1.msra.mxu0 0.0
    %119 = vmatprep.subr.mxu0 0.0
    %120 = vmatpush1.msra.mxu0 0.0
    %121 = vmatprep.subr.mxu0 0.0
    %122 = vmatpush1.msra.mxu0 0.0
    %123 = vmatprep.subr.mxu0 0.0
    %124 = vmatpush1.msra.mxu0 0.0
    %125 = vmatprep.subr.mxu0 0.0
    %126 = vmatpush1.msra.mxu0 0.0
    %127 = vmatprep.subr.mxu0 0.0
    %128 = vmatpush1.msra.mxu0 0.0
    %129 = vmatprep.subr.mxu0 0.0
    %130 = vmatpush1.msra.mxu0 0.0
    %131 = vmatprep.mubr.f32.mxu0 0.0
    %132 = vmatmul.mubr.f32.gmra.mrb[0].mxu0 %v62
    %v133 = vpop.f32.mrb[0].mxu0
    %v134 = vadd.f32 %v58, %v133
    %v135 = vpop.f32.mrb[0].mxu0
    %136 = vmatprep.mubr.f32.mxu0 0.0
    %137 = vmatmul.mubr.f32.gmra.mrb[0].mxu0 %v65
    %v138 = vpop.f32.mrb[0].mxu0
    %v139 = vadd.f32 %v58, %v138
    %v140 = vpop.f32.mrb[0].mxu0
    %141 = vdwg.mxu0
    %142 = vst.msk [vmem:[#allocation7] sm:$0xff] %vm60, %v134
    %143 = vst.msk [vmem:[#allocation7 + $0x8] sm:$0xff] %vm60, %v139
    // Predicated region
    $region22: #{tpu_custom_call.1} parent=1 // pred_check
      _
    $region23: #{tpu_custom_call.1} parent=1 // pred_check_branch
      %145 = sbr.rel (0) target = $region25
    $region24: #{tpu_custom_call.1} parent=1 // pred_region
      %s147 = ssub.s32 256, 256
      %148 = vsyncadd [#allocation4], %s147
      %s149 = sshll.u32 [#allocation7], 4
      %s150 = int_to_ptr.vmem [resolvable:$true] %s149
      %155 = dma.vmem_to_hbm [thread:$0]  %s150, 256, %s3, [#allocation4], 128, 128, 8
    $region25: #{tpu_custom_call.1} parent=1 // pred_fallthru
      _
    // Predicated region
    $region26: #{tpu_custom_call.1} parent=1 // pred_check
      _
    $region27: #{tpu_custom_call.1} parent=1 // pred_check_branch
      %157 = sbr.rel (0) target = $region29
    $region28: #{tpu_custom_call.1} parent=1 // pred_region
      %158 = dma.done [#allocation4], 256
    $region29: #{tpu_custom_call.1} parent=1 // pred_fallthru
      _
    %159 = vsyncpa [#allocation3], 1
    %160 = vsyncpa [#allocation6], 1
    %161 = vsyncpa [#allocation4], 1

</llo_original>
